<compile_context>
chip_gen: v7x
topology: tpu7x:2x2x1
jax: 0.10.0
libtpu: 0.0.40
codegen_flags: <defaults>
</compile_context>

<pallas_src>
import jax
import jax.numpy as jnp
import numpy as np
from jax import lax
from jax.experimental import pallas as pl
from jax.experimental.pallas import tpu as pltpu


def _rx_batched_kernel(theta_ref, out_ref):
    # theta_ref: (1, B) f32 in VMEM (batch along lanes).
    # out_ref:   (8, B) f32 in VMEM, rows = [re00, re01, re10, re11,
    #                                        im00, im01, im10, im11].
    shape = out_ref.shape                                   # (8, B), static
    half = theta_ref[...] * 0.5                             # (1, B)
    half8 = jnp.broadcast_to(half, shape)                   # sublane splat (cheap)
    c = jnp.cos(half8)                                      # EUP
    s = jnp.sin(half8)                                      # EUP
    # Masks built from iota (traced ops -> no captured array constants):
    #   rows 0,3 -> +cos(theta/2)   (diagonal of identity)
    #   rows 5,6 -> -sin(theta/2)   (off-diagonal of -i*PauliX, imag plane)
    rows = lax.broadcasted_iota(jnp.int32, shape, 0)
    cos_mask = ((rows == 0) | (rows == 3)).astype(jnp.float32)
    neg_sin_mask = -(((rows == 5) | (rows == 6)).astype(jnp.float32))
    out_ref[...] = c * cos_mask + s * neg_sin_mask


def _rx_gates_pallas(thetas_padded):
    """thetas_padded: (1, B) f32, B a multiple of 128. Returns (8, B) f32 plane."""
    b = thetas_padded.shape[-1]
    return pl.pallas_call(
        _rx_batched_kernel,
        out_shape=jax.ShapeDtypeStruct((8, b), jnp.float32),
        in_specs=[pl.BlockSpec(memory_space=pltpu.MemorySpace.VMEM)],
        out_specs=pl.BlockSpec(memory_space=pltpu.MemorySpace.VMEM),
    )(thetas_padded)


def batched_rx_forward(thetas):
    """thetas: (N,) float rotation parameters.
    Returns N RX-gate tt-cores, shape (N, 1, 2, 2, 1), complex64."""
    thetas = jnp.asarray(thetas, dtype=jnp.float32).reshape(-1)
    n = thetas.shape[0]
    b = max(128, ((n + 127) // 128) * 128)       # lane-dense: multiple of 128
    thetas_p = jnp.pad(thetas, (0, b - n)).reshape(1, b)

    out = _rx_gates_pallas(thetas_p)             # (8, b) f32
    re = out[:4, :n].T.reshape(n, 2, 2)
    im = out[4:, :n].T.reshape(n, 2, 2)
    return jax.lax.complex(re, im).reshape(n, 1, 2, 2, 1)


def single_rx_forward(theta):
    """theta: (1,) float rotation parameter (mirrors the PyTorch module's forward()).
    Returns the RX gate tt-core, shape (1, 2, 2, 1), complex64."""
    return batched_rx_forward(jnp.asarray(theta).reshape(1))[0]


if __name__ == "__main__":
    key = jax.random.PRNGKey(0)

    # Deterministic parameter init: theta = 2*pi*rand, small batch of gates.
    N = 8
    thetas = 2.0 * jnp.pi * jax.random.uniform(key, (N,), dtype=jnp.float32)

    gates = jax.block_until_ready(batched_rx_forward(thetas))
    gate0 = jax.block_until_ready(single_rx_forward(thetas[:1]))

    # Reference in plain JAX (tt-core identity and exp_pauli_x).
    iden = jnp.array([[[[1.0], [0.0]], [[0.0], [1.0]]]], dtype=jnp.complex64)
    epx = jnp.array([[[[0.0], [-1j]], [[-1j], [0.0]]]], dtype=jnp.complex64)
    ref = jnp.stack(
        [iden * jnp.cos(th / 2) + epx * jnp.sin(th / 2) for th in thetas]
    )

    assert gates.shape == (N, 1, 2, 2, 1)
    assert gates.dtype == jnp.complex64
    assert gate0.shape == (1, 2, 2, 1)
    np.testing.assert_allclose(np.asarray(gates), np.asarray(ref),
                               rtol=1e-6, atol=1e-6)
    np.testing.assert_allclose(np.asarray(gate0), np.asarray(ref[0]),
                               rtol=1e-6, atol=1e-6)

    print("KERNEL_OK")
</pallas_src>

<mosaic_0001>
module attributes {stable_mosaic.version = 11 : i64} {
  func.func @_rx_batched_kernel(%arg0: memref<1x128xf32, #tpu.memory_space<vmem>>, %arg1: memref<8x128xf32, #tpu.memory_space<vmem>>) attributes {dimension_semantics = [], scalar_prefetch = 0 : i64, scratch_operands = 0 : i64, tpu.core_type = #tpu.core_type<tc>} {
    %c0 = arith.constant 0 : index
    %c0_0 = arith.constant 0 : index
    %0 = vector.load %arg0[%c0, %c0_0] : memref<1x128xf32, #tpu.memory_space<vmem>>, vector<1x128xf32>
    %cst = arith.constant 5.000000e-01 : f32
    %1 = vector.broadcast %cst : f32 to vector<1x128xf32>
    %2 = arith.mulf %0, %1 : vector<1x128xf32>
    %3 = vector.shape_cast %2 : vector<1x128xf32> to vector<1x128xf32>
    %4 = vector.broadcast %3 : vector<1x128xf32> to vector<8x128xf32>
    %5 = math.cos %4 : vector<8x128xf32>
    %6 = math.sin %4 : vector<8x128xf32>
    %7 = tpu.iota {dimensions = array<i32: 0>} : vector<8x128xi32>
    %c0_i32 = arith.constant 0 : i32
    %8 = vector.broadcast %c0_i32 : i32 to vector<8x128xi32>
    %9 = arith.cmpi eq, %7, %8 : vector<8x128xi32>
    %c3_i32 = arith.constant 3 : i32
    %10 = vector.broadcast %c3_i32 : i32 to vector<8x128xi32>
    %11 = arith.cmpi eq, %7, %10 : vector<8x128xi32>
    %12 = arith.ori %9, %11 : vector<8x128xi1>
    %13 = arith.extui %12 : vector<8x128xi1> to vector<8x128xi32>
    %14 = arith.sitofp %13 : vector<8x128xi32> to vector<8x128xf32>
    %c5_i32 = arith.constant 5 : i32
    %15 = vector.broadcast %c5_i32 : i32 to vector<8x128xi32>
    %16 = arith.cmpi eq, %7, %15 : vector<8x128xi32>
    %c6_i32 = arith.constant 6 : i32
    %17 = vector.broadcast %c6_i32 : i32 to vector<8x128xi32>
    %18 = arith.cmpi eq, %7, %17 : vector<8x128xi32>
    %19 = arith.ori %16, %18 : vector<8x128xi1>
    %20 = arith.extui %19 : vector<8x128xi1> to vector<8x128xi32>
    %21 = arith.sitofp %20 : vector<8x128xi32> to vector<8x128xf32>
    %cst_1 = arith.constant 0.000000e+00 : f32
    %22 = vector.broadcast %cst_1 : f32 to vector<8x128xf32>
    %23 = arith.subf %22, %21 : vector<8x128xf32>
    %24 = arith.mulf %5, %14 : vector<8x128xf32>
    %25 = arith.mulf %6, %23 : vector<8x128xf32>
    %26 = arith.addf %24, %25 : vector<8x128xf32>
    %c0_2 = arith.constant 0 : index
    %c0_3 = arith.constant 0 : index
    %27 = vector.load %arg1[%c0_2, %c0_3] : memref<8x128xf32, #tpu.memory_space<vmem>>, vector<8x128xf32>
    tpu.vector_store %arg1[%c0_2, %c0_3], %26 {strides = array<i32>} : memref<8x128xf32, #tpu.memory_space<vmem>>, vector<8x128xf32>,
    return
  }
}

</mosaic_0001>

<llo_original>
// kernel: tpu_custom_call.1
$region0: #{tpu_custom_call.1}
  #allocation0 [shape = 'u32[]', space=smem, size = 0x4, offset = 0x4, fixed_abs, tag = 'smem constant byte address 0x4 - core index']
  #allocation1 [shape = 'u32[144,128]{1,0:T(1,128)}', space=vmem, size = 0x12000, scoped, tag = 'internal scratch']
  %s0 = inlined_call_operand.hbm [shape: f32[1,128], index: 0, kind: input, shape index: {}]
  %s1 = inlined_call_operand.hbm [shape: f32[8,128], index: 1, kind: output, shape index: {}]
  %s2 = sld [smem:[#allocation0]]
  $region18: #{tpu_custom_call.1} parent=0
    _
  %s4 = ssub.s32 1, %s2
  %s5 = scalar_select 0, %s4, %s2
  $region1: #{tpu_custom_call.1} parent=0
    #allocation2 [shape = 'u8[512]{0}', space=vmem, size = 0x400, scoped, tag = 'input window, operand 0, single buffered']
    #allocation3 [shape = 's32[1]{0}', space=sflag, size = 0x4, scoped, tag = 'scoped memory for tpu_custom_call.1']
    #allocation4 [shape = 's32[1]{0}', space=sflag, size = 0x4, scoped, tag = 'scoped memory for tpu_custom_call.1']
    #allocation5 [shape = 'u8[4096]{0}', space=vmem, size = 0x1000, scoped, tag = 'output window, operand 0, single buffered']
    %6 = vsyncpa [#allocation3], 0
    %7 = vsyncpa [#allocation4], 0
    // Predicated region
    $region2: #{tpu_custom_call.1} parent=1 // pred_check
      _
    $region3: #{tpu_custom_call.1} parent=1 // pred_check_branch
      %9 = sbr.rel (0) target = $region5
    $region4: #{tpu_custom_call.1} parent=1 // pred_region
      %s11 = ssub.s32 16, 16
      %12 = vsyncadd [#allocation3], %s11
      %s14 = sshll.u32 [#allocation2], 4
      %s15 = int_to_ptr.vmem [resolvable:$true] %s14
      %17 = dma.hbm_to_vmem [thread:$0]  %s0, 16, %s15, [#allocation3]
    $region5: #{tpu_custom_call.1} parent=1 // pred_fallthru
      _
    // Predicated region
    $region6: #{tpu_custom_call.1} parent=1 // pred_check
      _
    $region7: #{tpu_custom_call.1} parent=1 // pred_check_branch
      %19 = sbr.rel (0) target = $region9
    $region8: #{tpu_custom_call.1} parent=1 // pred_region
      %20 = dma.done [#allocation3], 16
    $region9: #{tpu_custom_call.1} parent=1 // pred_fallthru
      _
    %v21 = vld [vmem:[#allocation2] sm:$0x1]
    %v22 = vmul.f32 %v21, 0.5
    %v24 = vlaneseq
    %v25 = vshrl.u32 %v24, 7
    %v26 = vsub.s32 0, %v25
    %v27 = vrot.slane %v22, %v26
    %v29 = vand.u32 2147483647, %v27
    %vm30 = vcmp.le.f32.partialorder %v29, 0.7853982
    %vm31 = vcmp.lt.s32.totalorder %v27, 0
    %v32 = vand.u32 %v27, 2139095040
    %v33 = vshrl.u32 %v32, 23
    %v34 = vsub.s32 %v33, 127
    %v35 = vand.u32 2147483647, %v27
    %v36 = vand.u32 %v35, 8388607
    %v37 = vor.u32 %v36, 8388608
    %v38 = vsub.s32 0, %v37
    %v39 = vadd.s32 %v34, 1
    %vm40 = vcmp.gt.s32.totalorder %v39, 0
    %v41 = vsel %vm40, %v39, 0
    %v42 = vshrl.u32 %v41, 5
    %v43 = vand.u32 %v41, 31
    %v44 = vsub.s32 32, %v43
    %v45 = vshrl.u32 683565275, %v44
    %v46 = vshll.u32 683565275, %v43
    %v47 = vshrl.u32 2475754826, %v44
    %v48 = vor.u32 %v46, %v47
    %v49 = vshll.u32 2475754826, %v43
    %v50 = vshrl.u32 2131351028, %v44
    %v51 = vor.u32 %v49, %v50
    %v52 = vshll.u32 2131351028, %v43
    %v53 = vshrl.u32 2102212464, %v44
    %v54 = vor.u32 %v52, %v53
    %v55 = vshll.u32 2102212464, %v43
    %v56 = vshrl.u32 920167782, %v44
    %v57 = vor.u32 %v55, %v56
    %v58 = vshll.u32 920167782, %v43
    %v59 = vshrl.u32 1326507024, %v44
    %v60 = vor.u32 %v58, %v59
    %vm61 = vcmp.lt.s32.totalorder %v42, 1
    %vm62 = vcmp.lt.s32.totalorder %v42, 2
    %vm63 = vcmp.lt.s32.totalorder %v42, 3
    %vm64 = vcmp.lt.s32.totalorder %v42, 4
    %v65 = vsel %vm61, %v45, %v48
    %v66 = vsel %vm64, %v54, 2102212464
    %v67 = vsel %vm63, %v51, %v66
    %v68 = vsel %vm62, %v65, %v67
    %v69 = vsel %vm61, %v48, %v51
    %v70 = vsel %vm64, %v57, 920167782
    %v71 = vsel %vm63, %v54, %v70
    %v72 = vsel %vm62, %v69, %v71
    %v73 = vsel %vm61, %v51, %v54
    %v74 = vsel %vm64, %v60, 1326507024
    %v75 = vsel %vm63, %v57, %v74
    %v76 = vsel %vm62, %v73, %v75
    %v77 = vshll.u32 %v37, 8
    %v78 = vmul.u32.u64.compose %v77, %v76
    %v79 = vextract.low.u32 %v78
    %v80 = vextract.high.u32 %v78
    %v81 = vmul.u32.u64.compose %v77, %v72
    %v82 = vextract.low.u32 %v81
    %v83 = vextract.high.u32 %v81
    %v84 = vmul.u32 %v77, %v68
    %v85 = vadd.s32 %v80, %v82
    %vm86 = vc.u32 %v80, %v82
    %v87 = vadd.s32 %v83, 1
    %v88 = vsel %vm86, %v87, %v83
    %v89 = vadd.s32 %v84, %v88
    %v90 = vadd.s32 %v89, 536870912
    %v91 = vshrl.u32 %v90, 30
    %v92 = vshll.u32 %v91, 30
    %v93 = vsub.s32 %v89, %v92
    %vm94 = vcmp.lt.s32.totalorder %v93, 0
    %v95 = vsub.s32 0, %v93
    %v96 = vsel %vm94, %v95, %v93
    %v97 = vclz %v96
    %v98 = vsub.s32 %v97, 2
    %vm99 = vcmp.gt.s32.totalorder 0, %v98
    %v100 = vsel %vm99, 0, %v98
    %v101 = vsub.s32 32, %v100
    %v102 = vshll.u32 %v93, %v100
    %v103 = vshrl.u32 %v85, %v101
    %v104 = vor.u32 %v102, %v103
    %v105 = vsub.s32 4294967266, %v100
    %v106 = vadd.s32 %v105, 127
    %v107 = vshll.u32 %v106, 23
    %v108 = vor.u32 4788187, %v107
    %v109 = vand.u32 2147483647, %v108
    %v111 = vcvt.s32.f32 %v104
    %v112 = vmul.f32 %v111, %v109
    %v113 = vxor.u32 %v112, 2147483648
    %v114 = vsel %vm31, %v113, %v112
    %v115 = vsub.s32 4, %v91
    %v116 = vsel %vm31, %v115, %v91
    %v117 = vsel %vm30, %v27, %v114
    %v118 = vsel %vm30, 0, %v116
    %v119 = vcosq.f32.pop %v117
    %v120 = vsinq.f32.pop %v117
    %vm121 = vweird.f32 %v27
    %v122 = vand.u32 %v118, 3
    %vm123 = vcmp.lt.s32.totalorder %v122, 2
    %vm124 = vcmp.eq.s32.totalorder %v122, 0
    %v125 = vxor.u32 %v120, 2147483648
    %v126 = vsel %vm124, %v119, %v125
    %vm127 = vcmp.eq.s32.totalorder %v122, 2
    %v128 = vxor.u32 %v119, 2147483648
    %v129 = vsel %vm127, %v128, %v120
    %v130 = vsel %vm123, %v126, %v129
    %v131 = vsel %vm121, nan, %v130
    %v132 = vand.u32 2147483647, %v27
    %vm133 = vcmp.le.f32.partialorder %v132, 0.7853982
    %vm134 = vcmp.lt.s32.totalorder %v27, 0
    %v135 = vand.u32 %v27, 2139095040
    %v136 = vshrl.u32 %v135, 23
    %v137 = vsub.s32 %v136, 127
    %v138 = vand.u32 2147483647, %v27
    %v139 = vand.u32 %v138, 8388607
    %v140 = vor.u32 %v139, 8388608
    %v141 = vsub.s32 0, %v140
    %v142 = vadd.s32 %v137, 1
    %vm143 = vcmp.gt.s32.totalorder %v142, 0
    %v144 = vsel %vm143, %v142, 0
    %v145 = vshrl.u32 %v144, 5
    %v146 = vand.u32 %v144, 31
    %v147 = vsub.s32 32, %v146
    %v148 = vshrl.u32 683565275, %v147
    %v149 = vshll.u32 683565275, %v146
    %v150 = vshrl.u32 2475754826, %v147
    %v151 = vor.u32 %v149, %v150
    %v152 = vshll.u32 2475754826, %v146
    %v153 = vshrl.u32 2131351028, %v147
    %v154 = vor.u32 %v152, %v153
    %v155 = vshll.u32 2131351028, %v146
    %v156 = vshrl.u32 2102212464, %v147
    %v157 = vor.u32 %v155, %v156
    %v158 = vshll.u32 2102212464, %v146
    %v159 = vshrl.u32 920167782, %v147
    %v160 = vor.u32 %v158, %v159
    %v161 = vshll.u32 920167782, %v146
    %v162 = vshrl.u32 1326507024, %v147
    %v163 = vor.u32 %v161, %v162
    %vm164 = vcmp.lt.s32.totalorder %v145, 1
    %vm165 = vcmp.lt.s32.totalorder %v145, 2
    %vm166 = vcmp.lt.s32.totalorder %v145, 3
    %vm167 = vcmp.lt.s32.totalorder %v145, 4
    %v168 = vsel %vm164, %v148, %v151
    %v169 = vsel %vm167, %v157, 2102212464
    %v170 = vsel %vm166, %v154, %v169
    %v171 = vsel %vm165, %v168, %v170
    %v172 = vsel %vm164, %v151, %v154
    %v173 = vsel %vm167, %v160, 920167782
    %v174 = vsel %vm166, %v157, %v173
    %v175 = vsel %vm165, %v172, %v174
    %v176 = vsel %vm164, %v154, %v157
    %v177 = vsel %vm167, %v163, 1326507024
    %v178 = vsel %vm166, %v160, %v177
    %v179 = vsel %vm165, %v176, %v178
    %v180 = vshll.u32 %v140, 8
    %v181 = vmul.u32.u64.compose %v180, %v179
    %v182 = vextract.low.u32 %v181
    %v183 = vextract.high.u32 %v181
    %v184 = vmul.u32.u64.compose %v180, %v175
    %v185 = vextract.low.u32 %v184
    %v186 = vextract.high.u32 %v184
    %v187 = vmul.u32 %v180, %v171
    %v188 = vadd.s32 %v183, %v185
    %vm189 = vc.u32 %v183, %v185
    %v190 = vadd.s32 %v186, 1
    %v191 = vsel %vm189, %v190, %v186
    %v192 = vadd.s32 %v187, %v191
    %v193 = vadd.s32 %v192, 536870912
    %v194 = vshrl.u32 %v193, 30
    %v195 = vshll.u32 %v194, 30
    %v196 = vsub.s32 %v192, %v195
    %vm197 = vcmp.lt.s32.totalorder %v196, 0
    %v198 = vsub.s32 0, %v196
    %v199 = vsel %vm197, %v198, %v196
    %v200 = vclz %v199
    %v201 = vsub.s32 %v200, 2
    %vm202 = vcmp.gt.s32.totalorder 0, %v201
    %v203 = vsel %vm202, 0, %v201
    %v204 = vsub.s32 32, %v203
    %v205 = vshll.u32 %v196, %v203
    %v206 = vshrl.u32 %v188, %v204
    %v207 = vor.u32 %v205, %v206
    %v208 = vsub.s32 4294967266, %v203
    %v209 = vadd.s32 %v208, 127
    %v210 = vshll.u32 %v209, 23
    %v211 = vor.u32 4788187, %v210
    %v212 = vand.u32 2147483647, %v211
    %v214 = vcvt.s32.f32 %v207
    %v215 = vmul.f32 %v214, %v212
    %v216 = vxor.u32 %v215, 2147483648
    %v217 = vsel %vm134, %v216, %v215
    %v218 = vsub.s32 4, %v194
    %v219 = vsel %vm134, %v218, %v194
    %v220 = vsel %vm133, %v27, %v217
    %v221 = vsel %vm133, 0, %v219
    %v222 = vcosq.f32.pop %v220
    %v223 = vsinq.f32.pop %v220
    %vm224 = vweird.f32 %v27
    %v225 = vadd.s32 %v221, 3
    %v226 = vand.u32 %v225, 3
    %vm227 = vcmp.lt.s32.totalorder %v226, 2
    %vm228 = vcmp.eq.s32.totalorder %v226, 0
    %v229 = vxor.u32 %v223, 2147483648
    %v230 = vsel %vm228, %v222, %v229
    %vm231 = vcmp.eq.s32.totalorder %v226, 2
    %v232 = vxor.u32 %v222, 2147483648
    %v233 = vsel %vm231, %v232, %v223
    %v234 = vsel %vm227, %v230, %v233
    %v235 = vsel %vm224, nan, %v234
    %v236 = vlaneseq
    %v237 = vshrl.u32 %v236, 7
    %vm238 = vcmp.eq.s32.totalorder %v237, 0
    %vm239 = vcmp.eq.s32.totalorder %v237, 3
    %vm240 = vmor %vm238, %vm239
    %v241 = vsel %vm240, 1, 0
    %v242 = vcvt.s32.f32 %v241
    %vm243 = vcmp.eq.s32.totalorder %v237, 5
    %vm244 = vcmp.eq.s32.totalorder %v237, 6
    %vm245 = vmor %vm243, %vm244
    %v246 = vsel %vm245, 1, 0
    %v247 = vcvt.s32.f32 %v246
    %v248 = vsub.f32 0.0, %v247
    %v249 = vmul.f32 %v131, %v242
    %v250 = vmul.f32 %v235, %v248
    %v251 = vadd.f32 %v249, %v250
    %252 = vst [vmem:[#allocation5] sm:$0xff] %v251
    // Predicated region
    $region10: #{tpu_custom_call.1} parent=1 // pred_check
      _
    $region11: #{tpu_custom_call.1} parent=1 // pred_check_branch
      %254 = sbr.rel (0) target = $region13
    $region12: #{tpu_custom_call.1} parent=1 // pred_region
      %s256 = ssub.s32 128, 128
      %257 = vsyncadd [#allocation4], %s256
      %s259 = sshll.u32 [#allocation5], 4
      %s260 = int_to_ptr.vmem [resolvable:$true] %s259
      %262 = dma.vmem_to_hbm [thread:$0]  %s260, 128, %s1, [#allocation4]
    $region13: #{tpu_custom_call.1} parent=1 // pred_fallthru
      _
    // Predicated region
    $region14: #{tpu_custom_call.1} parent=1 // pred_check
      _
    $region15: #{tpu_custom_call.1} parent=1 // pred_check_branch
      %264 = sbr.rel (0) target = $region17
    $region16: #{tpu_custom_call.1} parent=1 // pred_region
      %265 = dma.done [#allocation4], 128
    $region17: #{tpu_custom_call.1} parent=1 // pred_fallthru
      _
    %266 = vsyncpa [#allocation3], 1
    %267 = vsyncpa [#allocation4], 1

</llo_original>
